<compile_context>
chip_gen: v7x
topology: tpu7x:2x2x1
jax: 0.10.0
libtpu: 0.0.40
codegen_flags: <defaults>
</compile_context>

<pallas_src>
import jax
import jax.numpy as jnp
from jax.experimental import pallas as pl
from jax.experimental.pallas import tpu as pltpu


def _round_up(x, m):
    return ((x + m - 1) // m) * m


def _mlp_kernel(x_ref, w1_ref, b1_ref, w2_ref, b2_ref, o_ref):
    # x:  (TB, F)       w1: (F, H_PAD)   b1: (1, H_PAD)
    # w2: (H_PAD, O)    b2: (1, O)       o:  (TB, O)
    x = x_ref[...]

    # Layer 1 (MXU, f32 accumulation) + ReLU.
    h = jnp.dot(x, w1_ref[...], preferred_element_type=jnp.float32) + b1_ref[...]
    h = jnp.maximum(h, 0.0)

    # Layer 2: tiny second matmul; padded hidden rows of w2 are exactly zero.
    y = jnp.dot(h, w2_ref[...], preferred_element_type=jnp.float32) + b2_ref[...]

    o_ref[...] = y.astype(o_ref.dtype)


def heart_disease_net(x, w1, b1, w2, b2, *, block_batch=4096):
    """Fused forward pass.

    x: (B, F) f32, w1: (F, H), b1: (1, H), w2: (H, O), b2: (1, O).
    Returns (B, O) f32.

    VMEM budget per grid step (double-buffered, lane-padded to 128):
      x tile  ~ TB * 512 B,  out tile ~ TB * 512 B  -> ~8 MiB at TB=4096,
    which fits v5e's 16 MiB default scoped limit and v7x's 32 MiB default.
    """
    B, F = x.shape
    H = w1.shape[1]
    O = w2.shape[1]
    assert w1.shape == (F, H)
    assert b1.shape == (1, H)
    assert w2.shape == (H, O)
    assert b2.shape == (1, O)

    f32 = jnp.float32
    x = x.astype(f32)

    # Pad only the (tiny) hidden dim to a sublane multiple; exact zeros so the
    # padded units contribute exactly 0 after ReLU and through w2.
    H_PAD = _round_up(max(H, 8), 8)
    w1_p = jnp.zeros((F, H_PAD), f32).at[:, :H].set(w1.astype(f32))
    b1_p = jnp.zeros((1, H_PAD), f32).at[:, :H].set(b1.astype(f32))
    w2_p = jnp.zeros((H_PAD, O), f32).at[:H, :].set(w2.astype(f32))
    b2_p = b2.astype(f32)

    # Batch tile: multiple of 8, capped at block_batch; ragged last block is
    # handled by Pallas (OOB writes dropped).
    TB = min(block_batch, _round_up(B, 8))
    nb = pl.cdiv(B, TB)

    cost = pl.CostEstimate(
        flops=2 * B * (F * H + H * O),
        transcendentals=0,
        bytes_accessed=4 * (B * (F + O) + F * H_PAD + H_PAD + H_PAD * O + O),
    )

    out = pl.pallas_call(
        _mlp_kernel,
        out_shape=jax.ShapeDtypeStruct((B, O), jnp.float32),
        grid_spec=pl.GridSpec(
            grid=(nb,),
            in_specs=[
                pl.BlockSpec((TB, F), lambda i: (i, 0)),       # x tile (pipelined)
                pl.BlockSpec((F, H_PAD), lambda i: (0, 0)),    # w1 (VMEM-resident)
                pl.BlockSpec((1, H_PAD), lambda i: (0, 0)),    # b1
                pl.BlockSpec((H_PAD, O), lambda i: (0, 0)),    # w2
                pl.BlockSpec((1, O), lambda i: (0, 0)),        # b2
            ],
            out_specs=pl.BlockSpec((TB, O), lambda i: (i, 0)),
        ),
        compiler_params=pltpu.CompilerParams(
            dimension_semantics=("parallel",),
        ),
        cost_estimate=cost,
    )(x, w1_p, b1_p, w2_p, b2_p)

    return out


def init_params(key, input_size, output_size, hidden=4):
    """Deterministic parameter init mirroring nn.Linear shapes.

    PyTorch nn.Linear(in, out) has weight (out, in) and bias (out,);
    we keep weights transposed to (in, out) for the y = x @ W + b kernel.
    """
    k1, k2, k3, k4 = jax.random.split(key, 4)
    bound1 = 1.0 / jnp.sqrt(input_size)
    bound2 = 1.0 / jnp.sqrt(hidden)
    w1 = jax.random.uniform(k1, (input_size, hidden), jnp.float32, -bound1, bound1)
    b1 = jax.random.uniform(k2, (1, hidden), jnp.float32, -bound1, bound1)
    w2 = jax.random.uniform(k3, (hidden, output_size), jnp.float32, -bound2, bound2)
    b2 = jax.random.uniform(k4, (1, output_size), jnp.float32, -bound2, bound2)
    return w1, b1, w2, b2


if __name__ == "__main__":
    input_size = 13   # classic heart-disease feature count
    output_size = 2
    batch = 8

    key = jax.random.PRNGKey(0)
    k_x, k_p = jax.random.split(key)
    x = jax.random.normal(k_x, (batch, input_size), jnp.float32)
    w1, b1, w2, b2 = init_params(k_p, input_size, output_size)

    out = heart_disease_net(x, w1, b1, w2, b2)
    out = jax.block_until_ready(out)

    # Pure-JAX reference check of the fused kernel.
    ref = jnp.maximum(x @ w1 + b1, 0.0) @ w2 + b2
    assert out.shape == (batch, output_size)
    assert jnp.allclose(out, ref, atol=1e-5, rtol=1e-5)

    # Multi-tile batch with a ragged last block (nb = 2, B % TB != 0) to
    # validate the batch-tiled / parallel / OOB-write-dropped path.
    big_b = 4096 + 40
    xb = jax.random.normal(jax.random.PRNGKey(1), (big_b, input_size), jnp.float32)
    out_big = jax.block_until_ready(heart_disease_net(xb, w1, b1, w2, b2))
    ref_big = jnp.maximum(xb @ w1 + b1, 0.0) @ w2 + b2
    assert out_big.shape == (big_b, output_size)
    assert jnp.allclose(out_big, ref_big, atol=1e-4, rtol=1e-4)

    print("KERNEL_OK")
</pallas_src>

<mosaic_0001>
module attributes {stable_mosaic.version = 11 : i64} {
  func.func @_mlp_kernel(%arg0: i32, %arg1: memref<8x13xf32, #tpu.memory_space<vmem>>, %arg2: memref<13x8xf32, #tpu.memory_space<vmem>>, %arg3: memref<1x8xf32, #tpu.memory_space<vmem>>, %arg4: memref<8x2xf32, #tpu.memory_space<vmem>>, %arg5: memref<1x2xf32, #tpu.memory_space<vmem>>, %arg6: memref<8x2xf32, #tpu.memory_space<vmem>>) attributes {dimension_semantics = [#tpu.dimension_semantics<parallel>], iteration_bounds = array<i64: 1>, scalar_prefetch = 0 : i64, scratch_operands = 0 : i64, tpu.core_type = #tpu.core_type<tc>, window_params = [{transform_indices = @transform_0, window_bounds = array<i64: 8, 13>}, {pipeline_mode = #tpu.pipeline_mode<synchronous>, transform_indices = @transform_1, window_bounds = array<i64: 13, 8>}, {pipeline_mode = #tpu.pipeline_mode<synchronous>, transform_indices = @transform_2, window_bounds = array<i64: 1, 8>}, {pipeline_mode = #tpu.pipeline_mode<synchronous>, transform_indices = @transform_3, window_bounds = array<i64: 8, 2>}, {pipeline_mode = #tpu.pipeline_mode<synchronous>, transform_indices = @transform_4, window_bounds = array<i64: 1, 2>}, {transform_indices = @transform_5, window_bounds = array<i64: 8, 2>}]} {
    %c0 = arith.constant 0 : index
    %c0_0 = arith.constant 0 : index
    %0 = vector.load %arg1[%c0, %c0_0] : memref<8x13xf32, #tpu.memory_space<vmem>>, vector<8x13xf32>
    %c0_1 = arith.constant 0 : index
    %c0_2 = arith.constant 0 : index
    %1 = vector.load %arg2[%c0_1, %c0_2] : memref<13x8xf32, #tpu.memory_space<vmem>>, vector<13x8xf32>
    %cst = arith.constant dense<0.000000e+00> : vector<8x8xf32>
    %2 = tpu.matmul %0, %1, %cst {dimension_numbers = #tpu.dot_dimension_numbers<[1], [0], [0], [1], [0, 0, 1, 1], [], []>} : vector<8x13xf32>, vector<13x8xf32>, vector<8x8xf32> -> vector<8x8xf32>
    %c0_3 = arith.constant 0 : index
    %c0_4 = arith.constant 0 : index
    %3 = vector.load %arg3[%c0_3, %c0_4] : memref<1x8xf32, #tpu.memory_space<vmem>>, vector<1x8xf32>
    %4 = vector.broadcast %3 : vector<1x8xf32> to vector<8x8xf32>
    %5 = arith.addf %2, %4 : vector<8x8xf32>
    %cst_5 = arith.constant 0.000000e+00 : f32
    %6 = vector.broadcast %cst_5 : f32 to vector<8x8xf32>
    %7 = arith.maximumf %5, %6 : vector<8x8xf32>
    %c0_6 = arith.constant 0 : index
    %c0_7 = arith.constant 0 : index
    %8 = vector.load %arg4[%c0_6, %c0_7] : memref<8x2xf32, #tpu.memory_space<vmem>>, vector<8x2xf32>
    %cst_8 = arith.constant dense<0.000000e+00> : vector<8x2xf32>
    %9 = tpu.matmul %7, %8, %cst_8 {dimension_numbers = #tpu.dot_dimension_numbers<[1], [0], [0], [1], [0, 0, 1, 1], [], []>} : vector<8x8xf32>, vector<8x2xf32>, vector<8x2xf32> -> vector<8x2xf32>
    %c0_9 = arith.constant 0 : index
    %c0_10 = arith.constant 0 : index
    %10 = vector.load %arg5[%c0_9, %c0_10] : memref<1x2xf32, #tpu.memory_space<vmem>>, vector<1x2xf32>
    %11 = vector.broadcast %10 : vector<1x2xf32> to vector<8x2xf32>
    %12 = arith.addf %9, %11 : vector<8x2xf32>
    %c0_11 = arith.constant 0 : index
    %c0_12 = arith.constant 0 : index
    %13 = vector.load %arg6[%c0_11, %c0_12] : memref<8x2xf32, #tpu.memory_space<vmem>>, vector<8x2xf32>
    tpu.vector_store %arg6[%c0_11, %c0_12], %12 {strides = array<i32>} : memref<8x2xf32, #tpu.memory_space<vmem>>, vector<8x2xf32>,
    return
  }
  func.func @transform_0(%arg0: i32) -> (i32, i32) {
    %c0_i32 = arith.constant 0 : i32
    %c0_i32_0 = arith.constant 0 : i32
    return %arg0, %c0_i32 : i32, i32
  }
  func.func @transform_1(%arg0: i32) -> (i32, i32) {
    %c0_i32 = arith.constant 0 : i32
    %c0_i32_0 = arith.constant 0 : i32
    %c0_i32_1 = arith.constant 0 : i32
    return %c0_i32, %c0_i32_0 : i32, i32
  }
  func.func @transform_2(%arg0: i32) -> (i32, i32) {
    %c0_i32 = arith.constant 0 : i32
    %c0_i32_0 = arith.constant 0 : i32
    %c0_i32_1 = arith.constant 0 : i32
    return %c0_i32, %c0_i32_0 : i32, i32
  }
  func.func @transform_3(%arg0: i32) -> (i32, i32) {
    %c0_i32 = arith.constant 0 : i32
    %c0_i32_0 = arith.constant 0 : i32
    %c0_i32_1 = arith.constant 0 : i32
    return %c0_i32, %c0_i32_0 : i32, i32
  }
  func.func @transform_4(%arg0: i32) -> (i32, i32) {
    %c0_i32 = arith.constant 0 : i32
    %c0_i32_0 = arith.constant 0 : i32
    %c0_i32_1 = arith.constant 0 : i32
    return %c0_i32, %c0_i32_0 : i32, i32
  }
  func.func @transform_5(%arg0: i32) -> (i32, i32) {
    %c0_i32 = arith.constant 0 : i32
    %c0_i32_0 = arith.constant 0 : i32
    return %arg0, %c0_i32 : i32, i32
  }
}

</mosaic_0001>

<llo_original>
// kernel: tpu_custom_call.1
$region0: #{tpu_custom_call.1}
  #allocation0 [shape = 'u32[]', space=smem, size = 0x4, offset = 0x4, fixed_abs, tag = 'smem constant byte address 0x4 - core index']
  #allocation1 [shape = 'u32[144,128]{1,0:T(1,128)}', space=vmem, size = 0x12000, scoped, tag = 'internal scratch']
  %s0 = inlined_call_operand.vmem [shape: f32[8,13], index: 0, kind: input, shape index: {}]
  %s1 = inlined_call_operand.vmem [shape: f32[13,8], index: 1, kind: input, shape index: {}]
  %s2 = inlined_call_operand.vmem [shape: f32[1,8], index: 2, kind: input, shape index: {}]
  %s3 = inlined_call_operand.vmem [shape: f32[8,2], index: 3, kind: input, shape index: {}]
  %s4 = inlined_call_operand.vmem [shape: f32[1,2], index: 4, kind: input, shape index: {}]
  %s5 = inlined_call_operand.vmem [shape: f32[8,2], index: 5, kind: output, shape index: {}]
  %s6 = sld [smem:[#allocation0]]
  $region30: #{tpu_custom_call.1} parent=0
    _
  %s8 = ssub.s32 1, %s6
  %s9 = scalar_select 0, %s8, %s6
  // Predicated region
  $region2: #{tpu_custom_call.1} parent=0 // pred_check
    _
  $region3: #{tpu_custom_call.1} parent=0 // pred_check_branch
    %11 = sbr.rel (0) target = $region5
  $region4: #{tpu_custom_call.1} parent=0 // pred_region
    _
  $region5: #{tpu_custom_call.1} parent=0 // pred_fallthru
    _
  // Predicated region
  $region6: #{tpu_custom_call.1} parent=0 // pred_check
    _
  $region7: #{tpu_custom_call.1} parent=0 // pred_check_branch
    %13 = sbr.rel (0) target = $region9
  $region8: #{tpu_custom_call.1} parent=0 // pred_region
    _
  $region9: #{tpu_custom_call.1} parent=0 // pred_fallthru
    _
  // Predicated region
  $region10: #{tpu_custom_call.1} parent=0 // pred_check
    _
  $region11: #{tpu_custom_call.1} parent=0 // pred_check_branch
    %15 = sbr.rel (0) target = $region13
  $region12: #{tpu_custom_call.1} parent=0 // pred_region
    _
  $region13: #{tpu_custom_call.1} parent=0 // pred_fallthru
    _
  // Predicated region
  $region14: #{tpu_custom_call.1} parent=0 // pred_check
    _
  $region15: #{tpu_custom_call.1} parent=0 // pred_check_branch
    %17 = sbr.rel (0) target = $region17
  $region16: #{tpu_custom_call.1} parent=0 // pred_region
    _
  $region17: #{tpu_custom_call.1} parent=0 // pred_fallthru
    _
  // Predicated region
  $region18: #{tpu_custom_call.1} parent=0 // pred_check
    _
  $region19: #{tpu_custom_call.1} parent=0 // pred_check_branch
    %19 = sbr.rel (0) target = $region21
  $region20: #{tpu_custom_call.1} parent=0 // pred_region
    _
  $region21: #{tpu_custom_call.1} parent=0 // pred_fallthru
    _
  %v20 = vld [vmem:[%s0] sm:$0xff]
  %v21 = vld [vmem:[%s1] sm:$0xff]
  %v22 = vld [vmem:[%s1 + $0x8] sm:$0x1f]
  %v23 = vld [vmem:[%s2] sm:$0x1]
  %v25 = vlaneseq
  %v26 = vshrl.u32 %v25, 7
  %v27 = vsub.s32 0, %v26
  %v28 = vrot.slane %v23, %v27
  %vm30 = vcmask 105472
  %v32 = vsel %vm30, %v20, 0
  %vm34 = vcmask 1044480
  %v36 = vsel %vm34, %v22, 0
  %38 = vmatprep.subr.mxu0 0.0
  %39 = vmatpush1.msra.mxu0 %v21
  %40 = vmatprep.subr.mxu0 0.0
  %41 = vmatpush1.msra.mxu0 %v36
  %42 = vmatprep.subr.mxu0 0.0
  %43 = vmatpush1.msra.mxu0 0.0
  %44 = vmatprep.subr.mxu0 0.0
  %45 = vmatpush1.msra.mxu0 0.0
  %46 = vmatprep.subr.mxu0 0.0
  %47 = vmatpush1.msra.mxu0 0.0
  %48 = vmatprep.subr.mxu0 0.0
  %49 = vmatpush1.msra.mxu0 0.0
  %50 = vmatprep.subr.mxu0 0.0
  %51 = vmatpush1.msra.mxu0 0.0
  %52 = vmatprep.subr.mxu0 0.0
  %53 = vmatpush1.msra.mxu0 0.0
  %54 = vmatprep.subr.mxu0 0.0
  %55 = vmatpush1.msra.mxu0 0.0
  %56 = vmatprep.subr.mxu0 0.0
  %57 = vmatpush1.msra.mxu0 0.0
  %58 = vmatprep.subr.mxu0 0.0
  %59 = vmatpush1.msra.mxu0 0.0
  %60 = vmatprep.subr.mxu0 0.0
  %61 = vmatpush1.msra.mxu0 0.0
  %62 = vmatprep.subr.mxu0 0.0
  %63 = vmatpush1.msra.mxu0 0.0
  %64 = vmatprep.subr.mxu0 0.0
  %65 = vmatpush1.msra.mxu0 0.0
  %66 = vmatprep.subr.mxu0 0.0
  %67 = vmatpush1.msra.mxu0 0.0
  %68 = vmatprep.subr.mxu0 0.0
  %69 = vmatpush1.msra.mxu0 0.0
  %70 = vmatprep.subr.mxu0 0.0
  %71 = vmatpush1.msra.mxu0 0.0
  %72 = vmatprep.subr.mxu0 0.0
  %73 = vmatpush1.msra.mxu0 0.0
  %74 = vmatprep.subr.mxu0 0.0
  %75 = vmatpush1.msra.mxu0 0.0
  %76 = vmatprep.subr.mxu0 0.0
  %77 = vmatpush1.msra.mxu0 0.0
  %78 = vmatprep.subr.mxu0 0.0
  %79 = vmatpush1.msra.mxu0 0.0
  %80 = vmatprep.subr.mxu0 0.0
  %81 = vmatpush1.msra.mxu0 0.0
  %82 = vmatprep.subr.mxu0 0.0
  %83 = vmatpush1.msra.mxu0 0.0
  %84 = vmatprep.subr.mxu0 0.0
  %85 = vmatpush1.msra.mxu0 0.0
  %86 = vmatprep.subr.mxu0 0.0
  %87 = vmatpush1.msra.mxu0 0.0
  %88 = vmatprep.subr.mxu0 0.0
  %89 = vmatpush1.msra.mxu0 0.0
  %90 = vmatprep.subr.mxu0 0.0
  %91 = vmatpush1.msra.mxu0 0.0
  %92 = vmatprep.subr.mxu0 0.0
  %93 = vmatpush1.msra.mxu0 0.0
  %94 = vmatprep.subr.mxu0 0.0
  %95 = vmatpush1.msra.mxu0 0.0
  %96 = vmatprep.subr.mxu0 0.0
  %97 = vmatpush1.msra.mxu0 0.0
  %98 = vmatprep.subr.mxu0 0.0
  %99 = vmatpush1.msra.mxu0 0.0
  %100 = vmatprep.subr.mxu0 0.0
  %101 = vmatpush1.msra.mxu0 0.0
  %102 = vmatprep.mubr.f32.mxu0 0.0
  %103 = vmatmul.mubr.f32.gmra.mrb[0].mxu0 %v32
  %v104 = vpop.f32.mrb[0].mxu0
  %v105 = vadd.f32 %v28, %v104
  %v106 = vpop.f32.mrb[0].mxu0
  %107 = vdwg.mxu0
  %v108 = vmax.f32 %v105, 0.0
  %v109 = vld [vmem:[%s3] sm:$0xff]
  %v110 = vld [vmem:[%s4] sm:$0x1]
  %v112 = vlaneseq
  %v113 = vshrl.u32 %v112, 7
  %v114 = vsub.s32 0, %v113
  %v115 = vrot.slane %v110, %v114
  %vm117 = vcmask 64512
  %v119 = vsel %vm117, %v108, 0
  %121 = vmatprep.subr.mxu0 0.0
  %122 = vmatpush1.msra.mxu0 %v109
  %123 = vmatprep.subr.mxu0 0.0
  %124 = vmatpush1.msra.mxu0 0.0
  %125 = vmatprep.subr.mxu0 0.0
  %126 = vmatpush1.msra.mxu0 0.0
  %127 = vmatprep.subr.mxu0 0.0
  %128 = vmatpush1.msra.mxu0 0.0
  %129 = vmatprep.subr.mxu0 0.0
  %130 = vmatpush1.msra.mxu0 0.0
  %131 = vmatprep.subr.mxu0 0.0
  %132 = vmatpush1.msra.mxu0 0.0
  %133 = vmatprep.subr.mxu0 0.0
  %134 = vmatpush1.msra.mxu0 0.0
  %135 = vmatprep.subr.mxu0 0.0
  %136 = vmatpush1.msra.mxu0 0.0
  %137 = vmatprep.subr.mxu0 0.0
  %138 = vmatpush1.msra.mxu0 0.0
  %139 = vmatprep.subr.mxu0 0.0
  %140 = vmatpush1.msra.mxu0 0.0
  %141 = vmatprep.subr.mxu0 0.0
  %142 = vmatpush1.msra.mxu0 0.0
  %143 = vmatprep.subr.mxu0 0.0
  %144 = vmatpush1.msra.mxu0 0.0
  %145 = vmatprep.subr.mxu0 0.0
  %146 = vmatpush1.msra.mxu0 0.0
  %147 = vmatprep.subr.mxu0 0.0
  %148 = vmatpush1.msra.mxu0 0.0
  %149 = vmatprep.subr.mxu0 0.0
  %150 = vmatpush1.msra.mxu0 0.0
  %151 = vmatprep.subr.mxu0 0.0
  %152 = vmatpush1.msra.mxu0 0.0
  %153 = vmatprep.subr.mxu0 0.0
  %154 = vmatpush1.msra.mxu0 0.0
  %155 = vmatprep.subr.mxu0 0.0
  %156 = vmatpush1.msra.mxu0 0.0
  %157 = vmatprep.subr.mxu0 0.0
  %158 = vmatpush1.msra.mxu0 0.0
  %159 = vmatprep.subr.mxu0 0.0
  %160 = vmatpush1.msra.mxu0 0.0
  %161 = vmatprep.subr.mxu0 0.0
  %162 = vmatpush1.msra.mxu0 0.0
  %163 = vmatprep.subr.mxu0 0.0
  %164 = vmatpush1.msra.mxu0 0.0
  %165 = vmatprep.subr.mxu0 0.0
  %166 = vmatpush1.msra.mxu0 0.0
  %167 = vmatprep.subr.mxu0 0.0
  %168 = vmatpush1.msra.mxu0 0.0
  %169 = vmatprep.subr.mxu0 0.0
  %170 = vmatpush1.msra.mxu0 0.0
  %171 = vmatprep.subr.mxu0 0.0
  %172 = vmatpush1.msra.mxu0 0.0
  %173 = vmatprep.subr.mxu0 0.0
  %174 = vmatpush1.msra.mxu0 0.0
  %175 = vmatprep.subr.mxu0 0.0
  %176 = vmatpush1.msra.mxu0 0.0
  %177 = vmatprep.subr.mxu0 0.0
  %178 = vmatpush1.msra.mxu0 0.0
  %179 = vmatprep.subr.mxu0 0.0
  %180 = vmatpush1.msra.mxu0 0.0
  %181 = vmatprep.subr.mxu0 0.0
  %182 = vmatpush1.msra.mxu0 0.0
  %183 = vmatprep.subr.mxu0 0.0
  %184 = vmatpush1.msra.mxu0 0.0
  %185 = vmatprep.mubr.f32.mxu0 0.0
  %186 = vmatmul.mubr.f32.gmra.mrb[0].mxu0 %v119
  %v187 = vpop.f32.mrb[0].mxu0
  %v188 = vadd.f32 %v115, %v187
  %v189 = vpop.f32.mrb[0].mxu0
  %190 = vdwg.mxu0
  %vm191 = vcmask 15360
  %192 = vst.msk [vmem:[%s5] sm:$0xff] %vm191, %v188
  // Predicated region
  $region22: #{tpu_custom_call.1} parent=0 // pred_check
    _
  $region23: #{tpu_custom_call.1} parent=0 // pred_check_branch
    %194 = sbr.rel (0) target = $region25
  $region24: #{tpu_custom_call.1} parent=0 // pred_region
    _
  $region25: #{tpu_custom_call.1} parent=0 // pred_fallthru
    _
  // Predicated region
  $region26: #{tpu_custom_call.1} parent=0 // pred_check
    _
  $region27: #{tpu_custom_call.1} parent=0 // pred_check_branch
    %196 = sbr.rel (0) target = $region29
  $region28: #{tpu_custom_call.1} parent=0 // pred_region
    _
  $region29: #{tpu_custom_call.1} parent=0 // pred_fallthru
    _

</llo_original>
